<compile_context>
chip_gen: v7x
topology: tpu7x:2x2x1
jax: 0.10.0
libtpu: 0.0.40
codegen_flags: <defaults>
</compile_context>

<pallas_src>
import functools

import jax
import jax.numpy as jnp
from jax.experimental import pallas as pl
from jax.experimental.pallas import tpu as pltpu


def _round_up(x: int, m: int) -> int:
    return ((x + m - 1) // m) * m


def vanet_kernel(x_ref, w1_ref, b1_ref, wq_ref, bq_ref, out_ref):
    # Shared trunk: h = relu(x @ W1 + b1).  MXU matmul with f32 accumulation,
    # bias add / ReLU in f32 on the VPU.
    h = jnp.dot(x_ref[...], w1_ref[...], preferred_element_type=jnp.float32)
    h = jnp.maximum(h + b1_ref[...], 0.0)

    # Fused dueling head (epilogue folded into Wq/bq wrapper-side):
    #   q = h @ Wq + bq  ==  v + a - mean(a)
    q = jnp.dot(h.astype(wq_ref.dtype), wq_ref[...],
                preferred_element_type=jnp.float32) + bq_ref[...]
    out_ref[...] = q.astype(out_ref.dtype)


def prepare_params(w1, b1, wa, ba, wv, bv, *, compute_dtype=jnp.bfloat16):
    """One-time weight preprocessing (hoisted out of the per-call hot path).

    Folds the dueling epilogue into a single (H, A) head weight / (1, A) bias.
    Fold is performed in f32; only the matmul operands are cast to
    `compute_dtype` (biases stay f32 for the VPU epilogue).
    """
    w1 = jnp.asarray(w1, jnp.float32)
    b1 = jnp.asarray(b1, jnp.float32).reshape(1, -1)
    wa = jnp.asarray(wa, jnp.float32)
    ba = jnp.asarray(ba, jnp.float32).reshape(1, -1)
    wv = jnp.asarray(wv, jnp.float32)          # (H, 1)
    bv = jnp.asarray(bv, jnp.float32).reshape(1, -1)   # (1, 1)

    wq = wa + (wv - jnp.mean(wa, axis=1, keepdims=True))        # (H, A)
    bq = ba + bv - jnp.mean(ba, axis=1, keepdims=True)          # (1, A)

    return (w1.astype(compute_dtype), b1, wq.astype(compute_dtype), bq)


@functools.partial(jax.jit, static_argnames=("block_b", "out_dtype"))
def vanet_forward(state, w1c, b1f, wqc, bqf, *, block_b: int = 8192,
                  out_dtype=jnp.float32):
    B, S = state.shape
    S_w, H = w1c.shape
    A = wqc.shape[1]
    assert S == S_w

    x = state.astype(w1c.dtype)   # matmul LHS in compute dtype; no pad copy

    # Sublane alignment of the packed compute dtype: 8 rows for f32, 16 for
    # bf16 (2 rows/sublane), 32 for 1-byte dtypes.
    align = max(8, 32 // jnp.dtype(w1c.dtype).itemsize)

    # Batch tile: aligned, capped by block_b, never (much) larger than B, and
    # sized so the grid has >= 2 steps once B is large enough (v7x: both TCs).
    tb = min(block_b,
             _round_up(B, align),
             max(align, _round_up(pl.cdiv(B, 2), align)))
    grid = (pl.cdiv(B, tb),)   # ragged last block: OOB output rows are masked

    return pl.pallas_call(
        vanet_kernel,
        out_shape=jax.ShapeDtypeStruct((B, A), out_dtype),
        grid_spec=pltpu.PrefetchScalarGridSpec(
            num_scalar_prefetch=0,
            grid=grid,
            in_specs=[
                pl.BlockSpec((tb, S), lambda i: (i, 0)),   # state tile (streamed)
                pl.BlockSpec((S, H), lambda i: (0, 0)),    # W1   (VMEM-resident)
                pl.BlockSpec((1, H), lambda i: (0, 0)),    # b1   (VMEM-resident)
                pl.BlockSpec((H, A), lambda i: (0, 0)),    # fused head Wq
                pl.BlockSpec((1, A), lambda i: (0, 0)),    # fused head bq
            ],
            out_specs=pl.BlockSpec((tb, A), lambda i: (i, 0)),
        ),
        compiler_params=pltpu.CompilerParams(
            dimension_semantics=("parallel",),
        ),
    )(x, w1c, b1f, wqc, bqf)


def init_params(key, state_dim, hidden_dim, action_dim):
    # Deterministic synthetic init (PyTorch-like uniform fan-in scaling).
    ks = jax.random.split(key, 6)

    def uni(k, shape, fan_in):
        bound = 1.0 / jnp.sqrt(fan_in)
        return jax.random.uniform(k, shape, jnp.float32, -bound, bound)

    w1 = uni(ks[0], (state_dim, hidden_dim), state_dim)
    b1 = uni(ks[1], (1, hidden_dim), state_dim)
    wa = uni(ks[2], (hidden_dim, action_dim), hidden_dim)
    ba = uni(ks[3], (1, action_dim), hidden_dim)
    wv = uni(ks[4], (hidden_dim, 1), hidden_dim)
    bv = uni(ks[5], (1, 1), hidden_dim)
    return w1, b1, wa, ba, wv, bv


def vanet_reference(state, w1, b1, wa, ba, wv, bv):
    # Pure-JAX f32 reference (matches the PyTorch module exactly).
    h = jnp.maximum(state @ w1 + b1, 0.0)
    a = h @ wa + ba
    v = h @ wv + bv
    return v + a - jnp.mean(a, axis=1, keepdims=True)


if __name__ == "__main__":
    state_dim, hidden_dim, action_dim = 16, 32, 4

    key = jax.random.PRNGKey(0)
    k_x, k_x2, k_p = jax.random.split(key, 3)
    params = init_params(k_p, state_dim, hidden_dim, action_dim)

    # Case 1: small aligned batch, f32 compute path -> tight check vs reference.
    batch = 8
    state = jax.random.normal(k_x, (batch, state_dim), jnp.float32)
    prep_f32 = prepare_params(*params, compute_dtype=jnp.float32)
    out_f32 = jax.block_until_ready(vanet_forward(state, *prep_f32))
    ref = vanet_reference(state, *params)
    assert out_f32.shape == (batch, action_dim)
    assert jnp.allclose(out_f32, ref, atol=1e-4, rtol=1e-4), "f32 mismatch vs reference"

    # Case 2: ragged batch (exercises the masked last grid block) with the
    # bf16 production fast path.
    batch2 = 37
    state2 = jax.random.normal(k_x2, (batch2, state_dim), jnp.float32)
    prep_bf16 = prepare_params(*params, compute_dtype=jnp.bfloat16)
    out_bf16 = jax.block_until_ready(vanet_forward(state2, *prep_bf16))
    ref2 = vanet_reference(state2, *params)
    assert out_bf16.shape == (batch2, action_dim)
    assert jnp.allclose(out_bf16, ref2, atol=5e-2, rtol=5e-2), "bf16 mismatch vs reference"

    print("KERNEL_OK")
</pallas_src>

<mosaic_0001>
module attributes {stable_mosaic.version = 11 : i64} {
  func.func @vanet_kernel(%arg0: i32, %arg1: memref<8x16xf32, #tpu.memory_space<vmem>>, %arg2: memref<16x32xf32, #tpu.memory_space<vmem>>, %arg3: memref<1x32xf32, #tpu.memory_space<vmem>>, %arg4: memref<32x4xf32, #tpu.memory_space<vmem>>, %arg5: memref<1x4xf32, #tpu.memory_space<vmem>>, %arg6: memref<8x4xf32, #tpu.memory_space<vmem>>) attributes {dimension_semantics = [#tpu.dimension_semantics<parallel>], iteration_bounds = array<i64: 1>, scalar_prefetch = 0 : i64, scratch_operands = 0 : i64, tpu.core_type = #tpu.core_type<tc>, window_params = [{transform_indices = @transform_0, window_bounds = array<i64: 8, 16>}, {pipeline_mode = #tpu.pipeline_mode<synchronous>, transform_indices = @transform_1, window_bounds = array<i64: 16, 32>}, {pipeline_mode = #tpu.pipeline_mode<synchronous>, transform_indices = @transform_2, window_bounds = array<i64: 1, 32>}, {pipeline_mode = #tpu.pipeline_mode<synchronous>, transform_indices = @transform_3, window_bounds = array<i64: 32, 4>}, {pipeline_mode = #tpu.pipeline_mode<synchronous>, transform_indices = @transform_4, window_bounds = array<i64: 1, 4>}, {transform_indices = @transform_5, window_bounds = array<i64: 8, 4>}]} {
    %c0 = arith.constant 0 : index
    %c0_0 = arith.constant 0 : index
    %0 = vector.load %arg1[%c0, %c0_0] : memref<8x16xf32, #tpu.memory_space<vmem>>, vector<8x16xf32>
    %c0_1 = arith.constant 0 : index
    %c0_2 = arith.constant 0 : index
    %1 = vector.load %arg2[%c0_1, %c0_2] : memref<16x32xf32, #tpu.memory_space<vmem>>, vector<16x32xf32>
    %cst = arith.constant dense<0.000000e+00> : vector<8x32xf32>
    %2 = tpu.matmul %0, %1, %cst {dimension_numbers = #tpu.dot_dimension_numbers<[1], [0], [0], [1], [0, 0, 1, 1], [], []>} : vector<8x16xf32>, vector<16x32xf32>, vector<8x32xf32> -> vector<8x32xf32>
    %c0_3 = arith.constant 0 : index
    %c0_4 = arith.constant 0 : index
    %3 = vector.load %arg3[%c0_3, %c0_4] : memref<1x32xf32, #tpu.memory_space<vmem>>, vector<1x32xf32>
    %4 = vector.broadcast %3 : vector<1x32xf32> to vector<8x32xf32>
    %5 = arith.addf %2, %4 : vector<8x32xf32>
    %cst_5 = arith.constant 0.000000e+00 : f32
    %6 = vector.broadcast %cst_5 : f32 to vector<8x32xf32>
    %7 = arith.maximumf %5, %6 : vector<8x32xf32>
    %c0_6 = arith.constant 0 : index
    %c0_7 = arith.constant 0 : index
    %8 = vector.load %arg4[%c0_6, %c0_7] : memref<32x4xf32, #tpu.memory_space<vmem>>, vector<32x4xf32>
    %cst_8 = arith.constant dense<0.000000e+00> : vector<8x4xf32>
    %9 = tpu.matmul %7, %8, %cst_8 {dimension_numbers = #tpu.dot_dimension_numbers<[1], [0], [0], [1], [0, 0, 1, 1], [], []>} : vector<8x32xf32>, vector<32x4xf32>, vector<8x4xf32> -> vector<8x4xf32>
    %c0_9 = arith.constant 0 : index
    %c0_10 = arith.constant 0 : index
    %10 = vector.load %arg5[%c0_9, %c0_10] : memref<1x4xf32, #tpu.memory_space<vmem>>, vector<1x4xf32>
    %11 = vector.broadcast %10 : vector<1x4xf32> to vector<8x4xf32>
    %12 = arith.addf %9, %11 : vector<8x4xf32>
    %c0_11 = arith.constant 0 : index
    %c0_12 = arith.constant 0 : index
    %13 = vector.load %arg6[%c0_11, %c0_12] : memref<8x4xf32, #tpu.memory_space<vmem>>, vector<8x4xf32>
    tpu.vector_store %arg6[%c0_11, %c0_12], %12 {strides = array<i32>} : memref<8x4xf32, #tpu.memory_space<vmem>>, vector<8x4xf32>,
    return
  }
  func.func @transform_0(%arg0: i32) -> (i32, i32) {
    %c0_i32 = arith.constant 0 : i32
    %c0_i32_0 = arith.constant 0 : i32
    return %arg0, %c0_i32 : i32, i32
  }
  func.func @transform_1(%arg0: i32) -> (i32, i32) {
    %c0_i32 = arith.constant 0 : i32
    %c0_i32_0 = arith.constant 0 : i32
    %c0_i32_1 = arith.constant 0 : i32
    return %c0_i32, %c0_i32_0 : i32, i32
  }
  func.func @transform_2(%arg0: i32) -> (i32, i32) {
    %c0_i32 = arith.constant 0 : i32
    %c0_i32_0 = arith.constant 0 : i32
    %c0_i32_1 = arith.constant 0 : i32
    return %c0_i32, %c0_i32_0 : i32, i32
  }
  func.func @transform_3(%arg0: i32) -> (i32, i32) {
    %c0_i32 = arith.constant 0 : i32
    %c0_i32_0 = arith.constant 0 : i32
    %c0_i32_1 = arith.constant 0 : i32
    return %c0_i32, %c0_i32_0 : i32, i32
  }
  func.func @transform_4(%arg0: i32) -> (i32, i32) {
    %c0_i32 = arith.constant 0 : i32
    %c0_i32_0 = arith.constant 0 : i32
    %c0_i32_1 = arith.constant 0 : i32
    return %c0_i32, %c0_i32_0 : i32, i32
  }
  func.func @transform_5(%arg0: i32) -> (i32, i32) {
    %c0_i32 = arith.constant 0 : i32
    %c0_i32_0 = arith.constant 0 : i32
    return %arg0, %c0_i32 : i32, i32
  }
}

</mosaic_0001>

<llo_original>
// kernel: vanet_forward.1
$region0: #{vanet_forward.1}
  #allocation0 [shape = 'u32[]', space=smem, size = 0x4, offset = 0x4, fixed_abs, tag = 'smem constant byte address 0x4 - core index']
  #allocation1 [shape = 'u32[144,128]{1,0:T(1,128)}', space=vmem, size = 0x12000, scoped, tag = 'internal scratch']
  %s0 = inlined_call_operand.vmem [shape: f32[8,16], index: 0, kind: input, shape index: {}]
  %s1 = inlined_call_operand.vmem [shape: f32[16,32], index: 1, kind: input, shape index: {}]
  %s2 = inlined_call_operand.vmem [shape: f32[1,32], index: 2, kind: input, shape index: {}]
  %s3 = inlined_call_operand.vmem [shape: f32[32,4], index: 3, kind: input, shape index: {}]
  %s4 = inlined_call_operand.vmem [shape: f32[1,4], index: 4, kind: input, shape index: {}]
  %s5 = inlined_call_operand.vmem [shape: f32[8,4], index: 5, kind: output, shape index: {}]
  %s6 = sld [smem:[#allocation0]]
  $region30: #{vanet_forward.1} parent=0
    _
  %s8 = ssub.s32 1, %s6
  %s9 = scalar_select 0, %s8, %s6
  // Predicated region
  $region2: #{vanet_forward.1} parent=0 // pred_check
    _
  $region3: #{vanet_forward.1} parent=0 // pred_check_branch
    %11 = sbr.rel (0) target = $region5
  $region4: #{vanet_forward.1} parent=0 // pred_region
    _
  $region5: #{vanet_forward.1} parent=0 // pred_fallthru
    _
  // Predicated region
  $region6: #{vanet_forward.1} parent=0 // pred_check
    _
  $region7: #{vanet_forward.1} parent=0 // pred_check_branch
    %13 = sbr.rel (0) target = $region9
  $region8: #{vanet_forward.1} parent=0 // pred_region
    _
  $region9: #{vanet_forward.1} parent=0 // pred_fallthru
    _
  // Predicated region
  $region10: #{vanet_forward.1} parent=0 // pred_check
    _
  $region11: #{vanet_forward.1} parent=0 // pred_check_branch
    %15 = sbr.rel (0) target = $region13
  $region12: #{vanet_forward.1} parent=0 // pred_region
    _
  $region13: #{vanet_forward.1} parent=0 // pred_fallthru
    _
  // Predicated region
  $region14: #{vanet_forward.1} parent=0 // pred_check
    _
  $region15: #{vanet_forward.1} parent=0 // pred_check_branch
    %17 = sbr.rel (0) target = $region17
  $region16: #{vanet_forward.1} parent=0 // pred_region
    _
  $region17: #{vanet_forward.1} parent=0 // pred_fallthru
    _
  // Predicated region
  $region18: #{vanet_forward.1} parent=0 // pred_check
    _
  $region19: #{vanet_forward.1} parent=0 // pred_check_branch
    %19 = sbr.rel (0) target = $region21
  $region20: #{vanet_forward.1} parent=0 // pred_region
    _
  $region21: #{vanet_forward.1} parent=0 // pred_fallthru
    _
  %v20 = vld [vmem:[%s0] sm:$0xff]
  %v21 = vld [vmem:[%s1] sm:$0xff]
  %v22 = vld [vmem:[%s1 + $0x8] sm:$0xff]
  %v23 = vld [vmem:[%s2] sm:$0x1]
  %v25 = vlaneseq
  %v26 = vshrl.u32 %v25, 7
  %v27 = vsub.s32 0, %v26
  %v28 = vrot.slane %v23, %v27
  %vm30 = vcmask 130048
  %v32 = vsel %vm30, %v20, 0
  %34 = vmatprep.subr.mxu0 0.0
  %35 = vmatpush1.msra.mxu0 %v21
  %36 = vmatprep.subr.mxu0 0.0
  %37 = vmatpush1.msra.mxu0 %v22
  %38 = vmatprep.subr.mxu0 0.0
  %39 = vmatpush1.msra.mxu0 0.0
  %40 = vmatprep.subr.mxu0 0.0
  %41 = vmatpush1.msra.mxu0 0.0
  %42 = vmatprep.subr.mxu0 0.0
  %43 = vmatpush1.msra.mxu0 0.0
  %44 = vmatprep.subr.mxu0 0.0
  %45 = vmatpush1.msra.mxu0 0.0
  %46 = vmatprep.subr.mxu0 0.0
  %47 = vmatpush1.msra.mxu0 0.0
  %48 = vmatprep.subr.mxu0 0.0
  %49 = vmatpush1.msra.mxu0 0.0
  %50 = vmatprep.subr.mxu0 0.0
  %51 = vmatpush1.msra.mxu0 0.0
  %52 = vmatprep.subr.mxu0 0.0
  %53 = vmatpush1.msra.mxu0 0.0
  %54 = vmatprep.subr.mxu0 0.0
  %55 = vmatpush1.msra.mxu0 0.0
  %56 = vmatprep.subr.mxu0 0.0
  %57 = vmatpush1.msra.mxu0 0.0
  %58 = vmatprep.subr.mxu0 0.0
  %59 = vmatpush1.msra.mxu0 0.0
  %60 = vmatprep.subr.mxu0 0.0
  %61 = vmatpush1.msra.mxu0 0.0
  %62 = vmatprep.subr.mxu0 0.0
  %63 = vmatpush1.msra.mxu0 0.0
  %64 = vmatprep.subr.mxu0 0.0
  %65 = vmatpush1.msra.mxu0 0.0
  %66 = vmatprep.subr.mxu0 0.0
  %67 = vmatpush1.msra.mxu0 0.0
  %68 = vmatprep.subr.mxu0 0.0
  %69 = vmatpush1.msra.mxu0 0.0
  %70 = vmatprep.subr.mxu0 0.0
  %71 = vmatpush1.msra.mxu0 0.0
  %72 = vmatprep.subr.mxu0 0.0
  %73 = vmatpush1.msra.mxu0 0.0
  %74 = vmatprep.subr.mxu0 0.0
  %75 = vmatpush1.msra.mxu0 0.0
  %76 = vmatprep.subr.mxu0 0.0
  %77 = vmatpush1.msra.mxu0 0.0
  %78 = vmatprep.subr.mxu0 0.0
  %79 = vmatpush1.msra.mxu0 0.0
  %80 = vmatprep.subr.mxu0 0.0
  %81 = vmatpush1.msra.mxu0 0.0
  %82 = vmatprep.subr.mxu0 0.0
  %83 = vmatpush1.msra.mxu0 0.0
  %84 = vmatprep.subr.mxu0 0.0
  %85 = vmatpush1.msra.mxu0 0.0
  %86 = vmatprep.subr.mxu0 0.0
  %87 = vmatpush1.msra.mxu0 0.0
  %88 = vmatprep.subr.mxu0 0.0
  %89 = vmatpush1.msra.mxu0 0.0
  %90 = vmatprep.subr.mxu0 0.0
  %91 = vmatpush1.msra.mxu0 0.0
  %92 = vmatprep.subr.mxu0 0.0
  %93 = vmatpush1.msra.mxu0 0.0
  %94 = vmatprep.subr.mxu0 0.0
  %95 = vmatpush1.msra.mxu0 0.0
  %96 = vmatprep.subr.mxu0 0.0
  %97 = vmatpush1.msra.mxu0 0.0
  %98 = vmatprep.mubr.f32.mxu0 0.0
  %99 = vmatmul.mubr.f32.gmra.mrb[0].mxu0 %v32
  %v100 = vpop.f32.mrb[0].mxu0
  %v101 = vadd.f32 %v28, %v100
  %v102 = vpop.f32.mrb[0].mxu0
  %103 = vdwg.mxu0
  %v104 = vmax.f32 %v101, 0.0
  %v105 = vld [vmem:[%s3] sm:$0xff]
  %v106 = vld [vmem:[%s3 + $0x8] sm:$0xff]
  %v107 = vld [vmem:[%s3 + $0x10] sm:$0xff]
  %v108 = vld [vmem:[%s3 + $0x18] sm:$0xff]
  %v109 = vld [vmem:[%s4] sm:$0x1]
  %v111 = vlaneseq
  %v112 = vshrl.u32 %v111, 7
  %v113 = vsub.s32 0, %v112
  %v114 = vrot.slane %v109, %v113
  %vm116 = vcmask 261120
  %v118 = vsel %vm116, %v104, 0
  %120 = vmatprep.subr.mxu0 0.0
  %121 = vmatpush1.msra.mxu0 %v105
  %122 = vmatprep.subr.mxu0 0.0
  %123 = vmatpush1.msra.mxu0 %v106
  %124 = vmatprep.subr.mxu0 0.0
  %125 = vmatpush1.msra.mxu0 %v107
  %126 = vmatprep.subr.mxu0 0.0
  %127 = vmatpush1.msra.mxu0 %v108
  %128 = vmatprep.subr.mxu0 0.0
  %129 = vmatpush1.msra.mxu0 0.0
  %130 = vmatprep.subr.mxu0 0.0
  %131 = vmatpush1.msra.mxu0 0.0
  %132 = vmatprep.subr.mxu0 0.0
  %133 = vmatpush1.msra.mxu0 0.0
  %134 = vmatprep.subr.mxu0 0.0
  %135 = vmatpush1.msra.mxu0 0.0
  %136 = vmatprep.subr.mxu0 0.0
  %137 = vmatpush1.msra.mxu0 0.0
  %138 = vmatprep.subr.mxu0 0.0
  %139 = vmatpush1.msra.mxu0 0.0
  %140 = vmatprep.subr.mxu0 0.0
  %141 = vmatpush1.msra.mxu0 0.0
  %142 = vmatprep.subr.mxu0 0.0
  %143 = vmatpush1.msra.mxu0 0.0
  %144 = vmatprep.subr.mxu0 0.0
  %145 = vmatpush1.msra.mxu0 0.0
  %146 = vmatprep.subr.mxu0 0.0
  %147 = vmatpush1.msra.mxu0 0.0
  %148 = vmatprep.subr.mxu0 0.0
  %149 = vmatpush1.msra.mxu0 0.0
  %150 = vmatprep.subr.mxu0 0.0
  %151 = vmatpush1.msra.mxu0 0.0
  %152 = vmatprep.subr.mxu0 0.0
  %153 = vmatpush1.msra.mxu0 0.0
  %154 = vmatprep.subr.mxu0 0.0
  %155 = vmatpush1.msra.mxu0 0.0
  %156 = vmatprep.subr.mxu0 0.0
  %157 = vmatpush1.msra.mxu0 0.0
  %158 = vmatprep.subr.mxu0 0.0
  %159 = vmatpush1.msra.mxu0 0.0
  %160 = vmatprep.subr.mxu0 0.0
  %161 = vmatpush1.msra.mxu0 0.0
  %162 = vmatprep.subr.mxu0 0.0
  %163 = vmatpush1.msra.mxu0 0.0
  %164 = vmatprep.subr.mxu0 0.0
  %165 = vmatpush1.msra.mxu0 0.0
  %166 = vmatprep.subr.mxu0 0.0
  %167 = vmatpush1.msra.mxu0 0.0
  %168 = vmatprep.subr.mxu0 0.0
  %169 = vmatpush1.msra.mxu0 0.0
  %170 = vmatprep.subr.mxu0 0.0
  %171 = vmatpush1.msra.mxu0 0.0
  %172 = vmatprep.subr.mxu0 0.0
  %173 = vmatpush1.msra.mxu0 0.0
  %174 = vmatprep.subr.mxu0 0.0
  %175 = vmatpush1.msra.mxu0 0.0
  %176 = vmatprep.subr.mxu0 0.0
  %177 = vmatpush1.msra.mxu0 0.0
  %178 = vmatprep.subr.mxu0 0.0
  %179 = vmatpush1.msra.mxu0 0.0
  %180 = vmatprep.subr.mxu0 0.0
  %181 = vmatpush1.msra.mxu0 0.0
  %182 = vmatprep.subr.mxu0 0.0
  %183 = vmatpush1.msra.mxu0 0.0
  %184 = vmatprep.mubr.f32.mxu0 0.0
  %185 = vmatmul.mubr.f32.gmra.mrb[0].mxu0 %v118
  %v186 = vpop.f32.mrb[0].mxu0
  %v187 = vadd.f32 %v114, %v186
  %v188 = vpop.f32.mrb[0].mxu0
  %189 = vdwg.mxu0
  %vm190 = vcmask 31744
  %191 = vst.msk [vmem:[%s5] sm:$0xff] %vm190, %v187
  // Predicated region
  $region22: #{vanet_forward.1} parent=0 // pred_check
    _
  $region23: #{vanet_forward.1} parent=0 // pred_check_branch
    %193 = sbr.rel (0) target = $region25
  $region24: #{vanet_forward.1} parent=0 // pred_region
    _
  $region25: #{vanet_forward.1} parent=0 // pred_fallthru
    _
  // Predicated region
  $region26: #{vanet_forward.1} parent=0 // pred_check
    _
  $region27: #{vanet_forward.1} parent=0 // pred_check_branch
    %195 = sbr.rel (0) target = $region29
  $region28: #{vanet_forward.1} parent=0 // pred_region
    _
  $region29: #{vanet_forward.1} parent=0 // pred_fallthru
    _

</llo_original>
